<compile_context>
chip_gen: v6e
topology: v6e:2x2x1
jax: 0.10.0
libtpu: 0.0.40
codegen_flags: <defaults>
</compile_context>

<pallas_src>
import functools

import jax
import jax.numpy as jnp
import numpy as np
from jax.experimental import pallas as pl
from jax.experimental.pallas import tpu as pltpu

_BIG = 1e30   # sentinel larger than any realistic squared distance
_EPS2 = 1e-12


def _mine_kernel(flag_ref, x_ref, xt2_ref, sqc_ref, sqr_ref, tcol_ref, trow_ref, vcol_ref,
                 ap2_ref, an2_ref, cmin2_ref, cmax2_ref, *, padded):
    k = pl.program_id(1)

    @pl.when(k == 0)
    def _init():
        ap2_ref[...] = jnp.zeros(ap2_ref.shape, ap2_ref.dtype)
        an2_ref[...] = jnp.full(an2_ref.shape, _BIG, an2_ref.dtype)
        cmin2_ref[...] = jnp.full(cmin2_ref.shape, _BIG, cmin2_ref.dtype)
        cmax2_ref[...] = jnp.zeros(cmax2_ref.shape, cmax2_ref.dtype)

    # (tr, d) @ (d, tn) on the MXU, f32 accumulation.  Column operand is pre-scaled by 2
    # wrapper-side so no `2 * gram` VPU pass is needed here.
    gram2 = jnp.dot(x_ref[...], xt2_ref[...], preferred_element_type=jnp.float32)   # (tr, tn)

    # Squared pairwise distances (sqrt deferred to the O(n) epilogue), clamped like the reference.
    dist2 = jnp.maximum(sqc_ref[...] + sqr_ref[...] - gram2, _EPS2)                 # (tr, tn)

    same = tcol_ref[...] == trow_ref[...]                                            # (tr, tn)
    if padded:
        valid = vcol_ref[...] != 0                                                   # (tr, 1)
        pos = jnp.logical_and(same, valid)
        not_neg = jnp.logical_or(same, jnp.logical_not(valid))
    else:
        valid = None
        pos = same
        not_neg = same

    # Hard mining on squared distances, accumulated into the VMEM-resident output blocks.
    ap2_ref[...] = jnp.maximum(
        ap2_ref[...], jnp.max(jnp.where(pos, dist2, 0.0), axis=0, keepdims=True))
    an2_ref[...] = jnp.minimum(
        an2_ref[...], jnp.min(jnp.where(not_neg, _BIG, dist2), axis=0, keepdims=True))

    # Column-min / column-max of the full distance matrix are only needed when the whole batch
    # is a single identity (no negatives anywhere); skip the two extra (tr, tn) passes otherwise.
    @pl.when(flag_ref[0] != 0)
    def _degenerate_stats():
        if padded:
            dmin_src = jnp.where(valid, dist2, _BIG)
            dmax_src = jnp.where(valid, dist2, 0.0)
        else:
            dmin_src = dist2
            dmax_src = dist2
        cmin2_ref[...] = jnp.minimum(
            cmin2_ref[...], jnp.min(dmin_src, axis=0, keepdims=True))
        cmax2_ref[...] = jnp.maximum(
            cmax2_ref[...], jnp.max(dmax_src, axis=0, keepdims=True))


def _plan_tiles(n):
    """Return (n_pad, tn, tr); both tiles divide n_pad and satisfy the (8,128) block rule."""
    if n <= 256:
        return n, n, n                       # single full block (no padding needed)
    n_pad = -(-n // 256) * 256               # pad to a multiple of 256 (MXU-friendly N on v6e/v7x)
    if n_pad % 512 == 0 and n_pad // 512 >= 2:
        tn = 512                             # >=2 column tiles -> both TensorCores on v7x
    else:
        tn = 256
    tr = 512 if n_pad % 512 == 0 else 256    # bounds live (tr, tn) temporaries independent of n
    return n_pad, tn, tr


def _vmem_limit_bytes(tr, tn, d, x_bytes):
    est = (2 * tr * d + 2 * tn * d) * x_bytes      # double-buffered feature tiles
    est += 8 * tr * tn * 4                         # gram / dist2 / mask / where temporaries
    est += 8 * tn * 4 + (2 << 20)                  # resident outputs + slack
    try:
        cap = int(pltpu.get_tpu_info().vmem_capacity_bytes)
    except Exception:
        cap = None
    if cap is None:
        ceiling = 48 << 20                         # unknown generation: fits every TPU
    elif cap <= (64 << 20):
        ceiling = 52 << 20                         # v7x: leave headroom for compiler scratch
    else:
        ceiling = 100 << 20                        # v5e / v6e: 128 MiB physical
    return int(min(max(est, 32 << 20), ceiling))


def triplet_loss_pallas(inputs, targets, *, margin=0.3, loss_multiplier=1.0, use_bf16_gram=True):
    """inputs: (n, d) float features, targets: (n,) int labels -> scalar float32 loss.

    Note: with use_bf16_gram=True, hard mining runs on bf16-rounded distances; near-ties may
    pick a different pair than the f32 reference (usually fine for training).
    """
    n, d = inputs.shape
    x = inputs.astype(jnp.bfloat16 if use_bf16_gram else jnp.float32)
    t = targets.astype(jnp.int32)

    n_pad, tn, tr = _plan_tiles(n)
    pad = n_pad - n
    padded = pad > 0
    if padded:
        x = jnp.pad(x, ((0, pad), (0, 0)))
        t = jnp.pad(t, (0, pad))
    valid = (jnp.arange(n_pad, dtype=jnp.int32) < n).astype(jnp.int32)

    # Norms from the same (possibly bf16-quantized) features so the dist2 diagonal stays ~0.
    # The factor 2 is folded into the transposed column operand (exact scaling, fused by XLA).
    sq = jnp.sum(x.astype(jnp.float32) ** 2, axis=1)               # (n_pad,)
    xt2 = jnp.transpose(x) * jnp.asarray(2, x.dtype)               # (d, n_pad)

    sq_col = sq.reshape(n_pad, 1)
    sq_row = sq.reshape(1, n_pad)
    t_col = t.reshape(n_pad, 1)
    t_row = t.reshape(1, n_pad)
    v_col = valid.reshape(n_pad, 1)

    # An anchor has no in-batch negative iff the whole batch is a single identity.
    single_class = jnp.all(targets == targets[0])
    flag = jnp.asarray(single_class, jnp.int32).reshape((1,))

    num_j = n_pad // tn
    num_k = n_pad // tr
    x_bytes = 2 if use_bf16_gram else 4
    vec = jax.ShapeDtypeStruct((1, n_pad), jnp.float32)
    kernel = functools.partial(_mine_kernel, padded=padded)

    grid_spec = pltpu.PrefetchScalarGridSpec(
        num_scalar_prefetch=1,
        grid=(num_j, num_k),
        in_specs=[
            pl.BlockSpec((tr, d), lambda j, k, f: (k, 0)),    # feature row tile   (samples i)
            pl.BlockSpec((d, tn), lambda j, k, f: (0, j)),    # 2*x^T column tile  (anchors j)
            pl.BlockSpec((tr, 1), lambda j, k, f: (k, 0)),    # |x_i|^2
            pl.BlockSpec((1, tn), lambda j, k, f: (0, j)),    # |x_j|^2
            pl.BlockSpec((tr, 1), lambda j, k, f: (k, 0)),    # labels (rows)
            pl.BlockSpec((1, tn), lambda j, k, f: (0, j)),    # labels (anchors)
            pl.BlockSpec((tr, 1), lambda j, k, f: (k, 0)),    # row validity (padding mask)
        ],
        out_specs=[pl.BlockSpec((1, tn), lambda j, k, f: (0, j)) for _ in range(4)],
    )

    ap2, an2, cmin2, cmax2 = pl.pallas_call(
        kernel,
        grid_spec=grid_spec,
        out_shape=(vec, vec, vec, vec),
        compiler_params=pltpu.CompilerParams(
            dimension_semantics=("parallel", "arbitrary"),
            vmem_limit_bytes=_vmem_limit_bytes(tr, tn, d, x_bytes)),
    )(flag, x, xt2, sq_col, sq_row, t_col, t_row, v_col)

    # O(n) epilogue: the only sqrts in the whole computation; padded anchors are sliced away.
    ap2 = ap2[0, :n]
    an2 = an2[0, :n]
    cmin2 = cmin2[0, :n]
    cmax2 = cmax2[0, :n]

    d_ap = jnp.sqrt(ap2)
    d_an_mined = jnp.sqrt(an2)
    dmax = jnp.sqrt(jnp.max(cmax2))
    d_an_degen = jnp.sqrt(cmin2) + dmax          # reference's `dist + mask * max(dist)` trick
    d_an = jnp.where(single_class, d_an_degen, d_an_mined)

    loss = jnp.mean(jnp.maximum(d_ap - d_an + margin, 0.0))
    return loss * loss_multiplier


def triplet_loss_ref(inputs, targets, *, margin=0.3, loss_multiplier=1.0):
    """Pure-JAX reference mirroring the PyTorch module (EUCLIDEAN_L2)."""
    x = inputs.astype(jnp.float32)
    sq = jnp.sum(x * x, axis=1, keepdims=True)
    gram = jnp.dot(x, x.T, precision=jax.lax.Precision.HIGHEST)
    dist = jnp.sqrt(jnp.maximum(sq + sq.T - 2.0 * gram, 1e-12))
    mask = (targets[:, None] == targets[None, :]).astype(jnp.float32)
    d_ap = jnp.max(dist * mask, axis=0)
    d_an = jnp.min(dist + mask * jnp.max(dist), axis=0)
    return loss_multiplier * jnp.mean(jnp.maximum(d_ap - d_an + margin, 0.0))


if __name__ == "__main__":
    key = jax.random.PRNGKey(0)
    kx, kt = jax.random.split(key)

    batch, feat_dim = 8, 32
    inputs = jax.random.normal(kx, (batch, feat_dim), dtype=jnp.float32)
    targets = jax.random.randint(kt, (batch,), 0, 4, dtype=jnp.int32)

    ref = jax.block_until_ready(
        triplet_loss_ref(inputs, targets, margin=0.3, loss_multiplier=1.0))

    # f32-gram path: tight check against the PyTorch-mirroring reference.
    loss_f32 = jax.block_until_ready(
        triplet_loss_pallas(inputs, targets, margin=0.3, loss_multiplier=1.0,
                            use_bf16_gram=False))
    np.testing.assert_allclose(np.asarray(loss_f32), np.asarray(ref), rtol=5e-3, atol=1e-3)

    # bf16-gram path (default / fast MXU rate): looser tolerance for a loss value.
    loss_bf16 = jax.block_until_ready(
        triplet_loss_pallas(inputs, targets, margin=0.3, loss_multiplier=1.0,
                            use_bf16_gram=True))
    np.testing.assert_allclose(np.asarray(loss_bf16), np.asarray(ref), rtol=3e-2, atol=5e-3)

    # Degenerate single-identity batch exercises the flag-gated cmin/cmax reconstruction path.
    targets_one = jnp.zeros((batch,), dtype=jnp.int32)
    ref_one = jax.block_until_ready(
        triplet_loss_ref(inputs, targets_one, margin=0.3, loss_multiplier=1.0))
    loss_one = jax.block_until_ready(
        triplet_loss_pallas(inputs, targets_one, margin=0.3, loss_multiplier=1.0,
                            use_bf16_gram=False))
    np.testing.assert_allclose(np.asarray(loss_one), np.asarray(ref_one), rtol=5e-3, atol=1e-3)

    print("KERNEL_OK")
</pallas_src>

<mosaic_0001>
module attributes {stable_mosaic.version = 11 : i64} {
  func.func @_mine_kernel(%arg0: i32, %arg1: i32, %arg2: memref<1xi32, #tpu.memory_space<smem>>, %arg3: memref<8x32xf32, #tpu.memory_space<vmem>>, %arg4: memref<32x8xf32, #tpu.memory_space<vmem>>, %arg5: memref<8x1xf32, #tpu.memory_space<vmem>>, %arg6: memref<1x8xf32, #tpu.memory_space<vmem>>, %arg7: memref<8x1xi32, #tpu.memory_space<vmem>>, %arg8: memref<1x8xi32, #tpu.memory_space<vmem>>, %arg9: memref<8x1xi32, #tpu.memory_space<vmem>>, %arg10: memref<1x8xf32, #tpu.memory_space<vmem>>, %arg11: memref<1x8xf32, #tpu.memory_space<vmem>>, %arg12: memref<1x8xf32, #tpu.memory_space<vmem>>, %arg13: memref<1x8xf32, #tpu.memory_space<vmem>>) attributes {dimension_semantics = [#tpu.dimension_semantics<parallel>, #tpu.dimension_semantics<arbitrary>], iteration_bounds = array<i64: 1, 1>, scalar_prefetch = 1 : i64, scratch_operands = 0 : i64, tpu.core_type = #tpu.core_type<tc>, window_params = [{transform_indices = @transform_0, window_bounds = array<i64: 8, 32>}, {transform_indices = @transform_1, window_bounds = array<i64: 32, 8>}, {transform_indices = @transform_2, window_bounds = array<i64: 8, 1>}, {transform_indices = @transform_3, window_bounds = array<i64: 1, 8>}, {transform_indices = @transform_4, window_bounds = array<i64: 8, 1>}, {transform_indices = @transform_5, window_bounds = array<i64: 1, 8>}, {transform_indices = @transform_6, window_bounds = array<i64: 8, 1>}, {transform_indices = @transform_7, window_bounds = array<i64: 1, 8>}, {transform_indices = @transform_8, window_bounds = array<i64: 1, 8>}, {transform_indices = @transform_9, window_bounds = array<i64: 1, 8>}, {transform_indices = @transform_10, window_bounds = array<i64: 1, 8>}]} {
    %c0_i32 = arith.constant 0 : i32
    %0 = arith.cmpi eq, %arg1, %c0_i32 : i32
    %1 = arith.extui %0 : i1 to i32
    %c0_i32_0 = arith.constant 0 : i32
    %2 = arith.cmpi ne, %1, %c0_i32_0 : i32
    scf.if %2 {
      %cst_28 = arith.constant 0.000000e+00 : f32
      %37 = vector.broadcast %cst_28 : f32 to vector<1x8xf32>
      %c0_29 = arith.constant 0 : index
      %c0_30 = arith.constant 0 : index
      %38 = vector.load %arg10[%c0_29, %c0_30] : memref<1x8xf32, #tpu.memory_space<vmem>>, vector<1x8xf32>
      tpu.vector_store %arg10[%c0_29, %c0_30], %37 {strides = array<i32>} : memref<1x8xf32, #tpu.memory_space<vmem>>, vector<1x8xf32>,
      %cst_31 = arith.constant 1.000000e+30 : f32
      %39 = vector.broadcast %cst_31 : f32 to vector<1x8xf32>
      %c0_32 = arith.constant 0 : index
      %c0_33 = arith.constant 0 : index
      %40 = vector.load %arg11[%c0_32, %c0_33] : memref<1x8xf32, #tpu.memory_space<vmem>>, vector<1x8xf32>
      tpu.vector_store %arg11[%c0_32, %c0_33], %39 {strides = array<i32>} : memref<1x8xf32, #tpu.memory_space<vmem>>, vector<1x8xf32>,
      %cst_34 = arith.constant 1.000000e+30 : f32
      %41 = vector.broadcast %cst_34 : f32 to vector<1x8xf32>
      %c0_35 = arith.constant 0 : index
      %c0_36 = arith.constant 0 : index
      %42 = vector.load %arg12[%c0_35, %c0_36] : memref<1x8xf32, #tpu.memory_space<vmem>>, vector<1x8xf32>
      tpu.vector_store %arg12[%c0_35, %c0_36], %41 {strides = array<i32>} : memref<1x8xf32, #tpu.memory_space<vmem>>, vector<1x8xf32>,
      %cst_37 = arith.constant 0.000000e+00 : f32
      %43 = vector.broadcast %cst_37 : f32 to vector<1x8xf32>
      %c0_38 = arith.constant 0 : index
      %c0_39 = arith.constant 0 : index
      %44 = vector.load %arg13[%c0_38, %c0_39] : memref<1x8xf32, #tpu.memory_space<vmem>>, vector<1x8xf32>
      tpu.vector_store %arg13[%c0_38, %c0_39], %43 {strides = array<i32>} : memref<1x8xf32, #tpu.memory_space<vmem>>, vector<1x8xf32>,
    } else {
    }
    %c0 = arith.constant 0 : index
    %c0_1 = arith.constant 0 : index
    %3 = vector.load %arg3[%c0, %c0_1] : memref<8x32xf32, #tpu.memory_space<vmem>>, vector<8x32xf32>
    %c0_2 = arith.constant 0 : index
    %c0_3 = arith.constant 0 : index
    %4 = vector.load %arg4[%c0_2, %c0_3] : memref<32x8xf32, #tpu.memory_space<vmem>>, vector<32x8xf32>
    %cst = arith.constant dense<0.000000e+00> : vector<8x8xf32>
    %5 = tpu.matmul %3, %4, %cst {dimension_numbers = #tpu.dot_dimension_numbers<[1], [0], [0], [1], [0, 0, 1, 1], [], []>} : vector<8x32xf32>, vector<32x8xf32>, vector<8x8xf32> -> vector<8x8xf32>
    %c0_4 = arith.constant 0 : index
    %c0_5 = arith.constant 0 : index
    %6 = vector.load %arg5[%c0_4, %c0_5] : memref<8x1xf32, #tpu.memory_space<vmem>>, vector<8x1xf32>
    %c0_6 = arith.constant 0 : index
    %c0_7 = arith.constant 0 : index
    %7 = vector.load %arg6[%c0_6, %c0_7] : memref<1x8xf32, #tpu.memory_space<vmem>>, vector<1x8xf32>
    %8 = vector.broadcast %6 : vector<8x1xf32> to vector<8x8xf32>
    %9 = vector.broadcast %7 : vector<1x8xf32> to vector<8x8xf32>
    %10 = arith.addf %8, %9 : vector<8x8xf32>
    %11 = arith.subf %10, %5 : vector<8x8xf32>
    %cst_8 = arith.constant 9.99999996E-13 : f32
    %12 = vector.broadcast %cst_8 : f32 to vector<8x8xf32>
    %13 = arith.maximumf %11, %12 : vector<8x8xf32>
    %c0_9 = arith.constant 0 : index
    %c0_10 = arith.constant 0 : index
    %14 = vector.load %arg7[%c0_9, %c0_10] : memref<8x1xi32, #tpu.memory_space<vmem>>, vector<8x1xi32>
    %c0_11 = arith.constant 0 : index
    %c0_12 = arith.constant 0 : index
    %15 = vector.load %arg8[%c0_11, %c0_12] : memref<1x8xi32, #tpu.memory_space<vmem>>, vector<1x8xi32>
    %16 = vector.broadcast %14 : vector<8x1xi32> to vector<8x8xi32>
    %17 = vector.broadcast %15 : vector<1x8xi32> to vector<8x8xi32>
    %18 = arith.cmpi eq, %16, %17 : vector<8x8xi32>
    %c0_13 = arith.constant 0 : index
    %c0_14 = arith.constant 0 : index
    %19 = vector.load %arg10[%c0_13, %c0_14] : memref<1x8xf32, #tpu.memory_space<vmem>>, vector<1x8xf32>
    %cst_15 = arith.constant 0.000000e+00 : f32
    %20 = vector.broadcast %cst_15 : f32 to vector<8x8xf32>
    %21 = arith.select %18, %13, %20 : vector<8x8xi1>, vector<8x8xf32>
    %cst_16 = arith.constant dense<0xFF800000> : vector<8xf32>
    %22 = vector.multi_reduction <maximumf>, %21, %cst_16 [0] : vector<8x8xf32> to vector<8xf32>
    %23 = vector.shape_cast %22 : vector<8xf32> to vector<1x8xf32>
    %24 = arith.maximumf %19, %23 : vector<1x8xf32>
    %c0_17 = arith.constant 0 : index
    %c0_18 = arith.constant 0 : index
    %25 = vector.load %arg10[%c0_17, %c0_18] : memref<1x8xf32, #tpu.memory_space<vmem>>, vector<1x8xf32>
    tpu.vector_store %arg10[%c0_17, %c0_18], %24 {strides = array<i32>} : memref<1x8xf32, #tpu.memory_space<vmem>>, vector<1x8xf32>,
    %c0_19 = arith.constant 0 : index
    %c0_20 = arith.constant 0 : index
    %26 = vector.load %arg11[%c0_19, %c0_20] : memref<1x8xf32, #tpu.memory_space<vmem>>, vector<1x8xf32>
    %cst_21 = arith.constant 1.000000e+30 : f32
    %27 = vector.broadcast %cst_21 : f32 to vector<8x8xf32>
    %28 = arith.select %18, %27, %13 : vector<8x8xi1>, vector<8x8xf32>
    %cst_22 = arith.constant dense<0x7F800000> : vector<8xf32>
    %29 = vector.multi_reduction <minimumf>, %28, %cst_22 [0] : vector<8x8xf32> to vector<8xf32>
    %30 = vector.shape_cast %29 : vector<8xf32> to vector<1x8xf32>
    %31 = arith.minimumf %26, %30 : vector<1x8xf32>
    %c0_23 = arith.constant 0 : index
    %c0_24 = arith.constant 0 : index
    %32 = vector.load %arg11[%c0_23, %c0_24] : memref<1x8xf32, #tpu.memory_space<vmem>>, vector<1x8xf32>
    tpu.vector_store %arg11[%c0_23, %c0_24], %31 {strides = array<i32>} : memref<1x8xf32, #tpu.memory_space<vmem>>, vector<1x8xf32>,
    %c0_25 = arith.constant 0 : index
    %33 = memref.load %arg2[%c0_25] : memref<1xi32, #tpu.memory_space<smem>>
    %c0_i32_26 = arith.constant 0 : i32
    %34 = arith.cmpi ne, %33, %c0_i32_26 : i32
    %35 = arith.extui %34 : i1 to i32
    %c0_i32_27 = arith.constant 0 : i32
    %36 = arith.cmpi ne, %35, %c0_i32_27 : i32
    scf.if %36 {
      %c0_28 = arith.constant 0 : index
      %c0_29 = arith.constant 0 : index
      %37 = vector.load %arg12[%c0_28, %c0_29] : memref<1x8xf32, #tpu.memory_space<vmem>>, vector<1x8xf32>
      %cst_30 = arith.constant dense<0x7F800000> : vector<8xf32>
      %38 = vector.multi_reduction <minimumf>, %13, %cst_30 [0] : vector<8x8xf32> to vector<8xf32>
      %39 = vector.shape_cast %38 : vector<8xf32> to vector<1x8xf32>
      %40 = arith.minimumf %37, %39 : vector<1x8xf32>
      %c0_31 = arith.constant 0 : index
      %c0_32 = arith.constant 0 : index
      %41 = vector.load %arg12[%c0_31, %c0_32] : memref<1x8xf32, #tpu.memory_space<vmem>>, vector<1x8xf32>
      tpu.vector_store %arg12[%c0_31, %c0_32], %40 {strides = array<i32>} : memref<1x8xf32, #tpu.memory_space<vmem>>, vector<1x8xf32>,
      %c0_33 = arith.constant 0 : index
      %c0_34 = arith.constant 0 : index
      %42 = vector.load %arg13[%c0_33, %c0_34] : memref<1x8xf32, #tpu.memory_space<vmem>>, vector<1x8xf32>
      %cst_35 = arith.constant dense<0xFF800000> : vector<8xf32>
      %43 = vector.multi_reduction <maximumf>, %13, %cst_35 [0] : vector<8x8xf32> to vector<8xf32>
      %44 = vector.shape_cast %43 : vector<8xf32> to vector<1x8xf32>
      %45 = arith.maximumf %42, %44 : vector<1x8xf32>
      %c0_36 = arith.constant 0 : index
      %c0_37 = arith.constant 0 : index
      %46 = vector.load %arg13[%c0_36, %c0_37] : memref<1x8xf32, #tpu.memory_space<vmem>>, vector<1x8xf32>
      tpu.vector_store %arg13[%c0_36, %c0_37], %45 {strides = array<i32>} : memref<1x8xf32, #tpu.memory_space<vmem>>, vector<1x8xf32>,
    } else {
    }
    return
  }
  func.func @transform_0(%arg0: i32, %arg1: i32, %arg2: memref<1xi32, #tpu.memory_space<smem>>) -> (i32, i32) {
    %c0_i32 = arith.constant 0 : i32
    %c0_i32_0 = arith.constant 0 : i32
    return %arg1, %c0_i32 : i32, i32
  }
  func.func @transform_1(%arg0: i32, %arg1: i32, %arg2: memref<1xi32, #tpu.memory_space<smem>>) -> (i32, i32) {
    %c0_i32 = arith.constant 0 : i32
    %c0_i32_0 = arith.constant 0 : i32
    return %c0_i32, %arg0 : i32, i32
  }
  func.func @transform_2(%arg0: i32, %arg1: i32, %arg2: memref<1xi32, #tpu.memory_space<smem>>) -> (i32, i32) {
    %c0_i32 = arith.constant 0 : i32
    %c0_i32_0 = arith.constant 0 : i32
    return %arg1, %c0_i32 : i32, i32
  }
  func.func @transform_3(%arg0: i32, %arg1: i32, %arg2: memref<1xi32, #tpu.memory_space<smem>>) -> (i32, i32) {
    %c0_i32 = arith.constant 0 : i32
    %c0_i32_0 = arith.constant 0 : i32
    return %c0_i32, %arg0 : i32, i32
  }
  func.func @transform_4(%arg0: i32, %arg1: i32, %arg2: memref<1xi32, #tpu.memory_space<smem>>) -> (i32, i32) {
    %c0_i32 = arith.constant 0 : i32
    %c0_i32_0 = arith.constant 0 : i32
    return %arg1, %c0_i32 : i32, i32
  }
  func.func @transform_5(%arg0: i32, %arg1: i32, %arg2: memref<1xi32, #tpu.memory_space<smem>>) -> (i32, i32) {
    %c0_i32 = arith.constant 0 : i32
    %c0_i32_0 = arith.constant 0 : i32
    return %c0_i32, %arg0 : i32, i32
  }
  func.func @transform_6(%arg0: i32, %arg1: i32, %arg2: memref<1xi32, #tpu.memory_space<smem>>) -> (i32, i32) {
    %c0_i32 = arith.constant 0 : i32
    %c0_i32_0 = arith.constant 0 : i32
    return %arg1, %c0_i32 : i32, i32
  }
  func.func @transform_7(%arg0: i32, %arg1: i32, %arg2: memref<1xi32, #tpu.memory_space<smem>>) -> (i32, i32) {
    %c0_i32 = arith.constant 0 : i32
    %c0_i32_0 = arith.constant 0 : i32
    return %c0_i32, %arg0 : i32, i32
  }
  func.func @transform_8(%arg0: i32, %arg1: i32, %arg2: memref<1xi32, #tpu.memory_space<smem>>) -> (i32, i32) {
    %c0_i32 = arith.constant 0 : i32
    %c0_i32_0 = arith.constant 0 : i32
    return %c0_i32, %arg0 : i32, i32
  }
  func.func @transform_9(%arg0: i32, %arg1: i32, %arg2: memref<1xi32, #tpu.memory_space<smem>>) -> (i32, i32) {
    %c0_i32 = arith.constant 0 : i32
    %c0_i32_0 = arith.constant 0 : i32
    return %c0_i32, %arg0 : i32, i32
  }
  func.func @transform_10(%arg0: i32, %arg1: i32, %arg2: memref<1xi32, #tpu.memory_space<smem>>) -> (i32, i32) {
    %c0_i32 = arith.constant 0 : i32
    %c0_i32_0 = arith.constant 0 : i32
    return %c0_i32, %arg0 : i32, i32
  }
}

</mosaic_0001>

<llo_original>
// kernel: tpu_custom_call.1
$region0: #{tpu_custom_call.1}
  #allocation0 [shape = 'u32[]', space=smem, size = 0x4, offset = 0x4, fixed_abs, tag = 'smem constant byte address 0x4 - core index']
  #allocation1 [shape = 'u32[144,128]{1,0:T(1,128)}', space=vmem, size = 0x12000, scoped, tag = 'internal scratch']
  #allocation2 [shape = 's32[1]{0}', space=sflag, size = 0x4, scoped, tag = 'scoped memory for tpu_custom_call.1']
  #allocation3 [shape = 's32[1]{0:T(128)S(6)}', space=smem, size = 0x200, scoped, tag = 'prefetched SMEM operand 0']
  %s0 = inlined_call_operand.<no memory space> [shape: s32[1], index: 0, kind: input, shape index: {}]
  %s1 = inlined_call_operand.vmem [shape: f32[8,32], index: 1, kind: input, shape index: {}]
  %s2 = inlined_call_operand.vmem [shape: f32[32,8], index: 2, kind: input, shape index: {}]
  %s3 = inlined_call_operand.vmem [shape: f32[8,1], index: 3, kind: input, shape index: {}]
  %s4 = inlined_call_operand.vmem [shape: f32[1,8], index: 4, kind: input, shape index: {}]
  %s5 = inlined_call_operand.vmem [shape: s32[8,1], index: 5, kind: input, shape index: {}]
  %s6 = inlined_call_operand.vmem [shape: s32[1,8], index: 6, kind: input, shape index: {}]
  %s7 = inlined_call_operand.vmem [shape: s32[8,1], index: 7, kind: input, shape index: {}]
  %s8 = inlined_call_operand.hbm [shape: f32[1,8], index: 8, kind: output, shape index: {0}]
  %s9 = inlined_call_operand.hbm [shape: f32[1,8], index: 9, kind: output, shape index: {1}]
  %s10 = inlined_call_operand.hbm [shape: f32[1,8], index: 10, kind: output, shape index: {2}]
  %s11 = inlined_call_operand.hbm [shape: f32[1,8], index: 11, kind: output, shape index: {3}]
  %12 = xla_tuple %s8, %s9, %s10, %s11
  %s13 = sld [smem:[#allocation0]]
  $region70: #{tpu_custom_call.1} parent=0
    _
  %s15 = ssub.s32 1, %s13
  %s16 = scalar_select 0, %s15, %s13
  %17 = sst [smem:[#allocation3]] %s0
  $region1: #{tpu_custom_call.1} parent=0
    #allocation4 [shape = 'u8[512]{0}', space=vmem, size = 0x400, scoped, tag = 'output window, operand 0, single buffered']
    #allocation5 [shape = 's32[1]{0}', space=sflag, size = 0x4, scoped, tag = 'scoped memory for tpu_custom_call.1']
    #allocation6 [shape = 'u8[512]{0}', space=vmem, size = 0x400, scoped, tag = 'output window, operand 1, single buffered']
    #allocation7 [shape = 's32[1]{0}', space=sflag, size = 0x4, scoped, tag = 'scoped memory for tpu_custom_call.1']
    #allocation8 [shape = 'u8[512]{0}', space=vmem, size = 0x400, scoped, tag = 'output window, operand 2, single buffered']
    #allocation9 [shape = 'u8[512]{0}', space=vmem, size = 0x400, scoped, tag = 'output window, operand 3, single buffered']
    #allocation10 [shape = 's32[1]{0}', space=sflag, size = 0x4, scoped, tag = 'scoped memory for tpu_custom_call.1']
    %18 = vsyncpa [#allocation5], 0
    %19 = vsyncpa [#allocation7], 0
    %20 = vsyncpa [#allocation10], 0
    // Predicated region
    $region2: #{tpu_custom_call.1} parent=1 // pred_check
      _
    $region3: #{tpu_custom_call.1} parent=1 // pred_check_branch
      %22 = sbr.rel (0) target = $region5
    $region4: #{tpu_custom_call.1} parent=1 // pred_region
      _
    $region5: #{tpu_custom_call.1} parent=1 // pred_fallthru
      _
    // Predicated region
    $region6: #{tpu_custom_call.1} parent=1 // pred_check
      _
    $region7: #{tpu_custom_call.1} parent=1 // pred_check_branch
      %24 = sbr.rel (0) target = $region9
    $region8: #{tpu_custom_call.1} parent=1 // pred_region
      _
    $region9: #{tpu_custom_call.1} parent=1 // pred_fallthru
      _
    // Predicated region
    $region10: #{tpu_custom_call.1} parent=1 // pred_check
      _
    $region11: #{tpu_custom_call.1} parent=1 // pred_check_branch
      %26 = sbr.rel (0) target = $region13
    $region12: #{tpu_custom_call.1} parent=1 // pred_region
      _
    $region13: #{tpu_custom_call.1} parent=1 // pred_fallthru
      _
    // Predicated region
    $region14: #{tpu_custom_call.1} parent=1 // pred_check
      _
    $region15: #{tpu_custom_call.1} parent=1 // pred_check_branch
      %28 = sbr.rel (0) target = $region17
    $region16: #{tpu_custom_call.1} parent=1 // pred_region
      _
    $region17: #{tpu_custom_call.1} parent=1 // pred_fallthru
      _
    // Predicated region
    $region18: #{tpu_custom_call.1} parent=1 // pred_check
      _
    $region19: #{tpu_custom_call.1} parent=1 // pred_check_branch
      %30 = sbr.rel (0) target = $region21
    $region20: #{tpu_custom_call.1} parent=1 // pred_region
      _
    $region21: #{tpu_custom_call.1} parent=1 // pred_fallthru
      _
    // Predicated region
    $region22: #{tpu_custom_call.1} parent=1 // pred_check
      _
    $region23: #{tpu_custom_call.1} parent=1 // pred_check_branch
      %32 = sbr.rel (0) target = $region25
    $region24: #{tpu_custom_call.1} parent=1 // pred_region
      _
    $region25: #{tpu_custom_call.1} parent=1 // pred_fallthru
      _
    // Predicated region
    $region26: #{tpu_custom_call.1} parent=1 // pred_check
      _
    $region27: #{tpu_custom_call.1} parent=1 // pred_check_branch
      %34 = sbr.rel (0) target = $region29
    $region28: #{tpu_custom_call.1} parent=1 // pred_region
      _
    $region29: #{tpu_custom_call.1} parent=1 // pred_fallthru
      _
    %p35 = scmp.eq.s32.totalorder 0, 0
    // Predicated region
    $region30: #{tpu_custom_call.1} parent=1 // pred_check
      %p36 = pneg %p35
    $region31: #{tpu_custom_call.1} parent=1 // pred_check_branch
      %38 = sbr.rel (%p36) target = $region33
    $region32: #{tpu_custom_call.1} parent=1 // pred_region
      %vm39 = vcmask 57344
      %40 = vst.msk [vmem:[#allocation4] sm:$0x1] %vm39, 0.0
      %41 = vst.msk [vmem:[#allocation6] sm:$0x1] %vm39, 1e+30
      %42 = vst.msk [vmem:[#allocation8] sm:$0x1] %vm39, 1e+30
      %43 = vst.msk [vmem:[#allocation9] sm:$0x1] %vm39, 0.0
    $region33: #{tpu_custom_call.1} parent=1 // pred_fallthru
      _
    %v44 = vld [vmem:[%s1] sm:$0xff]
    %v45 = vld [vmem:[%s2] sm:$0xff]
    %v46 = vld [vmem:[%s2 + $0x8] sm:$0xff]
    %v47 = vld [vmem:[%s2 + $0x10] sm:$0xff]
    %v48 = vld [vmem:[%s2 + $0x18] sm:$0xff]
    %vm49 = vcmask 261120
    %v51 = vsel %vm49, %v44, 0
    %53 = vmatprep.subr.mxu0 0.0
    %54 = vmatpush1.msra.mxu0 0.0
    %55 = vmatprep.subr.mxu0 0.0
    %56 = vmatpush1.msra.mxu0 0.0
    %57 = vmatprep.subr.mxu0 0.0
    %58 = vmatpush1.msra.mxu0 0.0
    %59 = vmatprep.subr.mxu0 0.0
    %60 = vmatpush1.msra.mxu0 0.0
    %61 = vmatprep.subr.mxu0 0.0
    %62 = vmatpush1.msra.mxu0 0.0
    %63 = vmatprep.subr.mxu0 0.0
    %64 = vmatpush1.msra.mxu0 0.0
    %65 = vmatprep.subr.mxu0 0.0
    %66 = vmatpush1.msra.mxu0 0.0
    %67 = vmatprep.subr.mxu0 0.0
    %68 = vmatpush1.msra.mxu0 0.0
    %69 = vmatprep.subr.mxu0 0.0
    %70 = vmatpush1.msra.mxu0 0.0
    %71 = vmatprep.subr.mxu0 0.0
    %72 = vmatpush1.msra.mxu0 0.0
    %73 = vmatprep.subr.mxu0 0.0
    %74 = vmatpush1.msra.mxu0 0.0
    %75 = vmatprep.subr.mxu0 0.0
    %76 = vmatpush1.msra.mxu0 0.0
    %77 = vmatprep.subr.mxu0 0.0
    %78 = vmatpush1.msra.mxu0 %v48
    %79 = vmatprep.subr.mxu0 0.0
    %80 = vmatpush1.msra.mxu0 %v47
    %81 = vmatprep.subr.mxu0 0.0
    %82 = vmatpush1.msra.mxu0 %v46
    %83 = vmatprep.subr.mxu0 0.0
    %84 = vmatpush1.msra.mxu0 %v45
    %85 = vmatprep.subr.mxu0 0.0
    %86 = vmatpush2.msra.mxu0 0.0
    %87 = vmatprep.subr.mxu0 0.0
    %88 = vmatpush2.msra.mxu0 0.0
    %89 = vmatprep.subr.mxu0 0.0
    %90 = vmatpush2.msra.mxu0 0.0
    %91 = vmatprep.subr.mxu0 0.0
    %92 = vmatpush2.msra.mxu0 0.0
    %93 = vmatprep.subr.mxu0 0.0
    %94 = vmatpush2.msra.mxu0 0.0
    %95 = vmatprep.subr.mxu0 0.0
    %96 = vmatpush2.msra.mxu0 0.0
    %97 = vmatprep.subr.mxu0 0.0
    %98 = vmatpush2.msra.mxu0 0.0
    %99 = vmatprep.subr.mxu0 0.0
    %100 = vmatpush2.msra.mxu0 0.0
    %101 = vmatprep.subr.mxu0 0.0
    %102 = vmatpush2.msra.mxu0 0.0
    %103 = vmatprep.subr.mxu0 0.0
    %104 = vmatpush2.msra.mxu0 0.0
    %105 = vmatprep.subr.mxu0 0.0
    %106 = vmatpush2.msra.mxu0 0.0
    %107 = vmatprep.subr.mxu0 0.0
    %108 = vmatpush2.msra.mxu0 0.0
    %109 = vmatprep.subr.mxu0 0.0
    %110 = vmatpush2.msra.mxu0 0.0
    %111 = vmatprep.subr.mxu0 0.0
    %112 = vmatpush2.msra.mxu0 0.0
    %113 = vmatprep.subr.mxu0 0.0
    %114 = vmatpush2.msra.mxu0 0.0
    %115 = vmatprep.subr.mxu0 0.0
    %116 = vmatpush2.msra.mxu0 0.0
    %117 = vmatprep.mubr.f32.mxu0 0.0
    %118 = vmatmul.mubr.f32.gmra.mxu0 %v51
    %v119 = vpop.f32.mrf.mxu0
    %v120 = vadd.f32 0.0, %v119
    %v121 = vpop.f32.mrf.mxu0
    %122 = vdwg.mxu0
    %v123 = vld [vmem:[%s3] sm:$0xff]
    %v124 = vld [vmem:[%s4] sm:$0x1]
    %126 = vset.pattern.permute.xlu0 0
    %127 = vperm.xlu0 %126, %v123
    %v128 = vpop.permute.xlu0 %127
    %v131 = vlaneseq
    %v132 = vshrl.u32 %v131, 7
    %v133 = vsub.s32 0, %v132
    %v134 = vrot.slane %v124, %v133
    %v136 = vadd.f32 %v128, %v134
    %v137 = vsub.f32 %v136, %v120
    %v138 = vmax.f32 %v137, 1e-12
    %v139 = vld [vmem:[%s5] sm:$0xff]
    %v140 = vld [vmem:[%s6] sm:$0x1]
    %141 = vset.pattern.permute.xlu0 0
    %142 = vperm.xlu0 %141, %v139
    %v143 = vpop.permute.xlu0 %142
    %v144 = vlaneseq
    %v145 = vshrl.u32 %v144, 7
    %v146 = vsub.s32 0, %v145
    %v147 = vrot.slane %v140, %v146
    %vm148 = vcmp.eq.s32.totalorder %v143, %v147
    %v149 = vld [vmem:[#allocation4] sm:$0x1]
    %v150 = vsel %vm148, %v138, 0.0
    %vm151 = vcmask 64512
    %v152 = vsel %vm151, %v150, -inf
    %v153 = vrot.slane %v152, 4
    %v154 = vmax.f32 %v152, %v153
    %v155 = vrot.slane %v154, 2
    %v156 = vmax.f32 %v154, %v155
    %v157 = vrot.slane %v156, 1
    %v158 = vmax.f32 %v156, %v157
    %v159 = vmax.f32 %v149, %v158
    %vm160 = vcmask 57344
    %161 = vst.msk [vmem:[#allocation4] sm:$0x1] %vm160, %v159
    %v162 = vld [vmem:[#allocation6] sm:$0x1]
    %v163 = vsel %vm148, 1e+30, %v138
    %v164 = vsel %vm151, %v163, inf
    %v165 = vrot.slane %v164, 4
    %v166 = vmin.f32 %v164, %v165
    %v167 = vrot.slane %v166, 2
    %v168 = vmin.f32 %v166, %v167
    %v169 = vrot.slane %v168, 1
    %v170 = vmin.f32 %v168, %v169
    %v171 = vmin.f32 %v162, %v170
    %172 = vst.msk [vmem:[#allocation6] sm:$0x1] %vm160, %v171
    %s173 = sld [smem:[#allocation3]]
    %p174 = scmp.ne.s32.totalorder %s173, 0
    // Predicated region
    $region34: #{tpu_custom_call.1} parent=1 // pred_check
      %p175 = pneg %p174
    $region35: #{tpu_custom_call.1} parent=1 // pred_check_branch
      %177 = sbr.rel (%p175) target = $region37
    $region36: #{tpu_custom_call.1} parent=1 // pred_region
      %v178 = vld [vmem:[#allocation8] sm:$0x1]
      %v179 = vsel %vm151, %v138, inf
      %v180 = vrot.slane %v179, 4
      %v181 = vmin.f32 %v179, %v180
      %v182 = vrot.slane %v181, 2
      %v183 = vmin.f32 %v181, %v182
      %v184 = vrot.slane %v183, 1
      %v185 = vmin.f32 %v183, %v184
      %v186 = vmin.f32 %v178, %v185
      %187 = vst.msk [vmem:[#allocation8] sm:$0x1] %vm160, %v186
      %v188 = vld [vmem:[#allocation9] sm:$0x1]
      %v189 = vsel %vm151, %v138, -inf
      %v190 = vrot.slane %v189, 4
      %v191 = vmax.f32 %v189, %v190
      %v192 = vrot.slane %v191, 2
      %v193 = vmax.f32 %v191, %v192
      %v194 = vrot.slane %v193, 1
      %v195 = vmax.f32 %v193, %v194
      %v196 = vmax.f32 %v188, %v195
      %197 = vst.msk [vmem:[#allocation9] sm:$0x1] %vm160, %v196
    $region37: #{tpu_custom_call.1} parent=1 // pred_fallthru
      _
    // Predicated region
    $region38: #{tpu_custom_call.1} parent=1 // pred_check
      _
    $region39: #{tpu_custom_call.1} parent=1 // pred_check_branch
      %199 = sbr.rel (0) target = $region41
    $region40: #{tpu_custom_call.1} parent=1 // pred_region
      %s201 = ssub.s32 16, 16
      %202 = vsyncadd [#allocation5], %s201
      %s204 = sshll.u32 [#allocation4], 4
      %s205 = int_to_ptr.vmem [resolvable:$true] %s204
      %207 = dma.vmem_to_hbm [thread:$0]  %s205, 16, %s8, [#allocation5]
    $region41: #{tpu_custom_call.1} parent=1 // pred_fallthru
      _
    // Predicated region
    $region42: #{tpu_custom_call.1} parent=1 // pred_check
      _
    $region43: #{tpu_custom_call.1} parent=1 // pred_check_branch
      %209 = sbr.rel (0) target = $region45
    $region44: #{tpu_custom_call.1} parent=1 // pred_region
      %s211 = ssub.s32 16, 16
      %212 = vsyncadd [#allocation7], %s211
      %s214 = sshll.u32 [#allocation6], 4
      %s215 = int_to_ptr.vmem [resolvable:$true] %s214
      %217 = dma.vmem_to_hbm [thread:$0]  %s215, 16, %s9, [#allocation7]
    $region45: #{tpu_custom_call.1} parent=1 // pred_fallthru
      _
    // Predicated region
    $region46: #{tpu_custom_call.1} parent=1 // pred_check
      _
    $region47: #{tpu_custom_call.1} parent=1 // pred_check_branch
      %219 = sbr.rel (0) target = $region49
    $region48: #{tpu_custom_call.1} parent=1 // pred_region
      %s221 = ssub.s32 16, 16
      %222 = vsyncadd [#allocation7], %s221
      %s224 = sshll.u32 [#allocation8], 4
      %s225 = int_to_ptr.vmem [resolvable:$true] %s224
      %227 = dma.vmem_to_hbm [thread:$0]  %s225, 16, %s10, [#allocation7]
    $region49: #{tpu_custom_call.1} parent=1 // pred_fallthru
      _
    // Predicated region
    $region50: #{tpu_custom_call.1} parent=1 // pred_check
      _
    $region51: #{tpu_custom_call.1} parent=1 // pred_check_branch
      %229 = sbr.rel (0) target = $region53
    $region52: #{tpu_custom_call.1} parent=1 // pred_region
      %s231 = ssub.s32 16, 16
      %232 = vsyncadd [#allocation10], %s231
      %s234 = sshll.u32 [#allocation9], 4
      %s235 = int_to_ptr.vmem [resolvable:$true] %s234
      %237 = dma.vmem_to_hbm [thread:$0]  %s235, 16, %s11, [#allocation10]
    $region53: #{tpu_custom_call.1} parent=1 // pred_fallthru
      _
    // Predicated region
    $region54: #{tpu_custom_call.1} parent=1 // pred_check
      _
    $region55: #{tpu_custom_call.1} parent=1 // pred_check_branch
      %239 = sbr.rel (0) target = $region57
    $region56: #{tpu_custom_call.1} parent=1 // pred_region
      %240 = dma.done [#allocation5], 16
    $region57: #{tpu_custom_call.1} parent=1 // pred_fallthru
      _
    // Predicated region
    $region58: #{tpu_custom_call.1} parent=1 // pred_check
      _
    $region59: #{tpu_custom_call.1} parent=1 // pred_check_branch
      %242 = sbr.rel (0) target = $region61
    $region60: #{tpu_custom_call.1} parent=1 // pred_region
      %243 = dma.done [#allocation7], 16
    $region61: #{tpu_custom_call.1} parent=1 // pred_fallthru
      _
    // Predicated region
    $region62: #{tpu_custom_call.1} parent=1 // pred_check
      _
    $region63: #{tpu_custom_call.1} parent=1 // pred_check_branch
      %245 = sbr.rel (0) target = $region65
    $region64: #{tpu_custom_call.1} parent=1 // pred_region
      %246 = dma.done [#allocation7], 16
    $region65: #{tpu_custom_call.1} parent=1 // pred_fallthru
      _
    // Predicated region
    $region66: #{tpu_custom_call.1} parent=1 // pred_check
      _
    $region67: #{tpu_custom_call.1} parent=1 // pred_check_branch
      %248 = sbr.rel (0) target = $region69
    $region68: #{tpu_custom_call.1} parent=1 // pred_region
      %249 = dma.done [#allocation10], 16
    $region69: #{tpu_custom_call.1} parent=1 // pred_fallthru
      _
    %250 = vsyncpa [#allocation5], 1
    %251 = vsyncpa [#allocation7], 1
    %252 = vsyncpa [#allocation10], 1

</llo_original>
